<compile_context>
chip_gen: v5e
topology: v5e:2x2
jax: 0.10.0
libtpu: 0.0.40
codegen_flags: <defaults>
</compile_context>

<pallas_src>
import jax
import jax.numpy as jnp
from jax.experimental import pallas as pl
from jax.experimental.pallas import tpu as pltpu


def _time_encode_kernel(t_ref, w_ref, b_ref, o_ref):
    # t_ref : (tile_n, 1) timestamps for this tile
    # w_ref : (1, D) frequencies,  b_ref : (1, D) phases   (D = padded dim)
    # o_ref : (tile_n, D)
    t = t_ref[...].astype(jnp.float32)          # (tile_n, 1)
    w = w_ref[...].astype(jnp.float32)          # (1, D)
    b = b_ref[...].astype(jnp.float32)          # (1, D)
    # Broadcast multiply-add on the VPU; jnp.cos lowers to range reduction +
    # polynomial (VALU/EUP).  Do not convert this to a K=1 matmul.
    o_ref[...] = jnp.cos(t * w + b).astype(o_ref.dtype)


def _round_up(x, m):
    return ((x + m - 1) // m) * m


def time_encode(t, w, b, *, tile_n=None, out_dtype=jnp.float32,
                pad_dim=True, vmem_limit_bytes=32 << 20):
    """cos(t[:, None] * w[None, :] + b) via a Pallas TPU kernel.

    t : (N,) timestamps, w : (dim,) frequencies, b : (dim,) phases.
    Returns (N, dim) of `out_dtype` (default float32, matching PyTorch).
    """
    t = jnp.asarray(t, dtype=jnp.float32).reshape(-1)
    w = jnp.asarray(w, dtype=jnp.float32).reshape(-1)
    b = jnp.asarray(b, dtype=jnp.float32).reshape(-1)
    n = t.shape[0]
    d = w.shape[0]

    # Lane-dense output: pad the feature dim to a multiple of 128 so the
    # output path uses full (unmasked) vector stores.  Padded columns use
    # w = b = 0 and are sliced off afterwards (or keep them if the consumer
    # can work with the padded width).
    d_pad = _round_up(d, 128) if pad_dim else d
    if d_pad != d:
        w = jnp.pad(w, (0, d_pad - d))
        b = jnp.pad(b, (0, d_pad - d))

    t2 = t.reshape(n, 1)
    w2 = w.reshape(1, d_pad)
    b2 = b.reshape(1, d_pad)

    out_itemsize = jnp.dtype(out_dtype).itemsize

    if tile_n is None:
        # Per grid step (single-buffered):
        #   output tile     : tile_n * d_pad * out_itemsize bytes
        #   timestamp tile  : tile_n * 128 * 4 bytes  ((tile_n, 1) f32 block is
        #                     lane-padded to 128 lanes in VMEM)
        # Target ~10 MiB live per step -> ~20 MiB double-buffered, leaving
        # headroom under the explicit 32 MiB scoped-VMEM limit on every
        # generation (v5e default is only 16 MiB, so keep the limit explicit).
        per_row_bytes = d_pad * out_itemsize + 128 * 4
        budget_rows = max(8, ((10 << 20) // per_row_bytes) // 8 * 8)
        # Keep >= 4 grid steps when N allows so the "parallel" axis actually
        # splits across v7x's 2 TensorCores (2+ steps per core).
        steps_cap = _round_up(pl.cdiv(n, 4), 8)
        tile_n = min(budget_rows, steps_cap)
    # Round to a sublane multiple (8) and never exceed (rounded) N.
    tile_n = max(8, _round_up(min(tile_n, n), 8))

    grid = (pl.cdiv(n, tile_n),)

    cost = pl.CostEstimate(
        flops=2 * n * d_pad,                                 # mul + add
        transcendentals=n * d_pad,                           # cos
        bytes_accessed=out_itemsize * n * d_pad + 4 * (n + 2 * d_pad),
    )

    out = pl.pallas_call(
        _time_encode_kernel,
        out_shape=jax.ShapeDtypeStruct((n, d_pad), out_dtype),
        grid=grid,
        in_specs=[
            pl.BlockSpec((tile_n, 1), lambda i: (i, 0)),      # timestamps tile
            pl.BlockSpec((1, d_pad), lambda i: (0, 0)),       # w (resident)
            pl.BlockSpec((1, d_pad), lambda i: (0, 0)),       # b (resident)
        ],
        out_specs=pl.BlockSpec((tile_n, d_pad), lambda i: (i, 0)),
        compiler_params=pltpu.CompilerParams(
            # Row axis is independent -> shard across TensorCores (v7x has 2).
            dimension_semantics=("parallel",),
            vmem_limit_bytes=vmem_limit_bytes,
        ),
        cost_estimate=cost,
    )(t2, w2, b2)

    if d_pad != d:
        out = out[:, :d]
    return out


def _reference_time_encode(t, w, b):
    t = jnp.asarray(t, dtype=jnp.float32).reshape(-1, 1)
    return jnp.cos(t * w.reshape(1, -1) + b.reshape(1, -1))


def _make_params(dim):
    # Parameter init matching the PyTorch module:
    #   w = 1 / 10 ** linspace(0, 9, dim), b = 0
    w = (1.0 / (10.0 ** jnp.linspace(0.0, 9.0, dim))).astype(jnp.float32)
    b = jnp.zeros((dim,), dtype=jnp.float32)
    return w, b


if __name__ == "__main__":
    key = jax.random.PRNGKey(0)
    num_timestamps = 200
    t = jax.random.uniform(key, (num_timestamps,), dtype=jnp.float32,
                           minval=0.0, maxval=10.0)

    # Case 1: dim multiple of 128 (already lane-dense).
    # Case 2: TGN-style dim=100 (exercises the pad-to-128 + slice path).
    for dim in (128, 100):
        w, b = _make_params(dim)
        out = time_encode(t, w, b)
        out = jax.block_until_ready(out)
        ref = _reference_time_encode(t, w, b)
        assert out.shape == (num_timestamps, dim)
        assert jnp.allclose(out, ref, atol=1e-4, rtol=1e-5), (
            f"mismatch vs reference TimeEncode (dim={dim})")

    print("KERNEL_OK")
</pallas_src>

<mosaic_0001>
module attributes {stable_mosaic.version = 11 : i64} {
  func.func @_time_encode_kernel(%arg0: i32, %arg1: memref<56x1xf32, #tpu.memory_space<vmem>>, %arg2: memref<1x128xf32, #tpu.memory_space<vmem>>, %arg3: memref<1x128xf32, #tpu.memory_space<vmem>>, %arg4: memref<56x128xf32, #tpu.memory_space<vmem>>) attributes {dimension_semantics = [#tpu.dimension_semantics<parallel>], iteration_bounds = array<i64: 4>, scalar_prefetch = 0 : i64, scratch_operands = 0 : i64, tpu.core_type = #tpu.core_type<tc>, window_params = [{transform_indices = @transform_0, window_bounds = array<i64: 56, 1>}, {pipeline_mode = #tpu.pipeline_mode<synchronous>, transform_indices = @transform_1, window_bounds = array<i64: 1, 128>}, {pipeline_mode = #tpu.pipeline_mode<synchronous>, transform_indices = @transform_2, window_bounds = array<i64: 1, 128>}, {transform_indices = @transform_3, window_bounds = array<i64: 56, 128>}]} {
    %c0 = arith.constant 0 : index
    %c0_0 = arith.constant 0 : index
    %0 = vector.load %arg1[%c0, %c0_0] : memref<56x1xf32, #tpu.memory_space<vmem>>, vector<56x1xf32>
    %c0_1 = arith.constant 0 : index
    %c0_2 = arith.constant 0 : index
    %1 = vector.load %arg2[%c0_1, %c0_2] : memref<1x128xf32, #tpu.memory_space<vmem>>, vector<1x128xf32>
    %c0_3 = arith.constant 0 : index
    %c0_4 = arith.constant 0 : index
    %2 = vector.load %arg3[%c0_3, %c0_4] : memref<1x128xf32, #tpu.memory_space<vmem>>, vector<1x128xf32>
    %3 = vector.broadcast %0 : vector<56x1xf32> to vector<56x128xf32>
    %4 = vector.broadcast %1 : vector<1x128xf32> to vector<56x128xf32>
    %5 = arith.mulf %3, %4 : vector<56x128xf32>
    %6 = vector.broadcast %2 : vector<1x128xf32> to vector<56x128xf32>
    %7 = arith.addf %5, %6 : vector<56x128xf32>
    %8 = math.cos %7 : vector<56x128xf32>
    %c0_5 = arith.constant 0 : index
    %c0_6 = arith.constant 0 : index
    %9 = vector.load %arg4[%c0_5, %c0_6] : memref<56x128xf32, #tpu.memory_space<vmem>>, vector<56x128xf32>
    tpu.vector_store %arg4[%c0_5, %c0_6], %8 {strides = array<i32>} : memref<56x128xf32, #tpu.memory_space<vmem>>, vector<56x128xf32>,
    return
  }
  func.func @transform_0(%arg0: i32) -> (i32, i32) {
    %c0_i32 = arith.constant 0 : i32
    %c0_i32_0 = arith.constant 0 : i32
    return %arg0, %c0_i32 : i32, i32
  }
  func.func @transform_1(%arg0: i32) -> (i32, i32) {
    %c0_i32 = arith.constant 0 : i32
    %c0_i32_0 = arith.constant 0 : i32
    %c0_i32_1 = arith.constant 0 : i32
    return %c0_i32, %c0_i32_0 : i32, i32
  }
  func.func @transform_2(%arg0: i32) -> (i32, i32) {
    %c0_i32 = arith.constant 0 : i32
    %c0_i32_0 = arith.constant 0 : i32
    %c0_i32_1 = arith.constant 0 : i32
    return %c0_i32, %c0_i32_0 : i32, i32
  }
  func.func @transform_3(%arg0: i32) -> (i32, i32) {
    %c0_i32 = arith.constant 0 : i32
    %c0_i32_0 = arith.constant 0 : i32
    return %arg0, %c0_i32 : i32, i32
  }
}

</mosaic_0001>

<llo_original>
// kernel: tpu_custom_call.1
$region0: #{tpu_custom_call.1}
  #allocation0 [shape = 'u32[]', space=smem, size = 0x4, offset = 0x4, fixed_abs, tag = 'smem constant byte address 0x4 - core index']
  #allocation1 [shape = 'u32[72,128]{1,0:T(1,128)}', space=vmem, size = 0x9000, scoped, tag = 'internal scratch']
  %s0 = inlined_call_operand.vmem [shape: f32[200,1], index: 0, kind: input, shape index: {}]
  %s1 = inlined_call_operand.vmem [shape: f32[1,128], index: 1, kind: input, shape index: {}]
  %s2 = inlined_call_operand.vmem [shape: f32[1,128], index: 2, kind: input, shape index: {}]
  %s3 = inlined_call_operand.hbm [shape: f32[200,128], index: 3, kind: output, shape index: {}]
  %s4 = sld [smem:[#allocation0]]
  $region45: #{tpu_custom_call.1} parent=0
    _
  %s6 = ssub.s32 1, %s4
  %s7 = scalar_select 0, %s6, %s4
  $region1: #{tpu_custom_call.1} parent=0
    #allocation2 [shape = 'u8[57344]{0}', space=vmem, size = 0xe000, scoped, tag = 'output window, operand 0']
    #allocation3 [shape = 's32[2]{0}', space=sflag, size = 0x8, scoped, tag = 'scoped memory for tpu_custom_call.1']
    %8 = vsyncpa [#allocation3], 0
    %s9 = scalar_lea.sflag [#allocation3], 1
    %10 = vsyncpa %s9, 0
    loop: start=0, step=1, limit=6
    $region2: #{tpu_custom_call.1} parent=1 // loop_pre_header
      _
    $region3: #{tpu_custom_call.1} parent=1 // loop_header
      %s12 = sphi 0, %s16
      %p13 = scmp.ge.s32.totalorder %s12, 6
      %s22 = sphi 0, %s24
      %s25 = sphi 0, %s22
      %s26 = sphi 0, %s25
      %s42 = sphi 0, %s26
      %s46 = sphi 0, %s46
      %s48 = sphi 0, %s46
      %s49 = sphi 0, %s48
      %s63 = sphi 0, %s49
      %s67 = sphi 0, %s67
      %s69 = sphi 0, %s67
      %s70 = sphi 0, %s69
      %s84 = sphi 0, %s70
      %s90 = sphi 0, %s92
      %s93 = sphi 0, %s90
      %s94 = sphi 0, %s93
      %s110 = sphi 0, %s94
    $region4: #{tpu_custom_call.1} parent=1 // loop_header_branch
      %15 = sbr.rel (%p13) target = $region8
    $region5: #{tpu_custom_call.1} parent=1 // loop_body
      %s17 = ssub.s32 %s12, 1
      %s18 = ssub.s32 %s12, 2
      %s19 = sadd.s32 %s12, 1
      %s20 = ssub.s32 %s12, %s19
      %p21 = scmp.eq.s32.totalorder %s20, 0
      %s23 = sadd.s32 %s22, 1
      %s24 = scalar_select %p21, %s22, %s23
      %p27 = pneg %p21
      %p28 = scmp.eq.s32.totalorder %s12, 3
      %p29 = por %p27, %p28
      %p30 = scmp.ne.s32.totalorder %s22, %s25
      %p31 = scmp.eq.s32.totalorder %s12, 0
      %p32 = por %p30, %p31
      %p33 = scmp.ne.s32.totalorder %s22, %s25
      %p34 = scmp.eq.s32.totalorder %s17, 3
      %p35 = por %p33, %p34
      %p36 = scmp.ne.s32.totalorder %s25, %s26
      %p37 = scmp.eq.s32.totalorder %s17, 0
      %p38 = por %p36, %p37
      %p39 = scmp.ne.s32.totalorder %s25, %s26
      %p40 = scmp.eq.s32.totalorder %s18, 3
      %p41 = por %p39, %p40
      %p43 = scmp.ne.s32.totalorder %s26, %s42
      %p44 = scmp.eq.s32.totalorder %s18, 0
      %p45 = por %p43, %p44
      %s47 = sadd.s32 %s46, 1
      %p50 = scmp.eq.s32.totalorder %s12, 3
      %p51 = scmp.ne.s32.totalorder %s46, %s48
      %p52 = scmp.eq.s32.totalorder %s12, 0
      %p53 = por %p51, %p52
      %p54 = scmp.ne.s32.totalorder %s46, %s48
      %p55 = scmp.eq.s32.totalorder %s17, 3
      %p56 = por %p54, %p55
      %p57 = scmp.ne.s32.totalorder %s48, %s49
      %p58 = scmp.eq.s32.totalorder %s17, 0
      %p59 = por %p57, %p58
      %p60 = scmp.ne.s32.totalorder %s48, %s49
      %p61 = scmp.eq.s32.totalorder %s18, 3
      %p62 = por %p60, %p61
      %p64 = scmp.ne.s32.totalorder %s49, %s63
      %p65 = scmp.eq.s32.totalorder %s18, 0
      %p66 = por %p64, %p65
      %s68 = sadd.s32 %s67, 1
      %p71 = scmp.eq.s32.totalorder %s12, 3
      %p72 = scmp.ne.s32.totalorder %s67, %s69
      %p73 = scmp.eq.s32.totalorder %s12, 0
      %p74 = por %p72, %p73
      %p75 = scmp.ne.s32.totalorder %s67, %s69
      %p76 = scmp.eq.s32.totalorder %s17, 3
      %p77 = por %p75, %p76
      %p78 = scmp.ne.s32.totalorder %s69, %s70
      %p79 = scmp.eq.s32.totalorder %s17, 0
      %p80 = por %p78, %p79
      %p81 = scmp.ne.s32.totalorder %s69, %s70
      %p82 = scmp.eq.s32.totalorder %s18, 3
      %p83 = por %p81, %p82
      %p85 = scmp.ne.s32.totalorder %s70, %s84
      %p86 = scmp.eq.s32.totalorder %s18, 0
      %p87 = por %p85, %p86
      %s88 = ssub.s32 %s12, %s19
      %p89 = scmp.eq.s32.totalorder %s88, 0
      %s91 = sadd.s32 %s90, 1
      %s92 = scalar_select %p89, %s90, %s91
      %p95 = pneg %p89
      %p96 = scmp.eq.s32.totalorder %s12, 3
      %p97 = por %p95, %p96
      %p98 = scmp.ne.s32.totalorder %s90, %s93
      %p99 = scmp.eq.s32.totalorder %s12, 0
      %p100 = por %p98, %p99
      %p101 = scmp.ne.s32.totalorder %s90, %s93
      %p102 = scmp.eq.s32.totalorder %s17, 3
      %p103 = por %p101, %p102
      %p104 = scmp.ne.s32.totalorder %s93, %s94
      %p105 = scmp.eq.s32.totalorder %s17, 0
      %p106 = por %p104, %p105
      %p107 = scmp.ne.s32.totalorder %s93, %s94
      %p108 = scmp.eq.s32.totalorder %s18, 3
      %p109 = por %p107, %p108
      %p111 = scmp.ne.s32.totalorder %s94, %s110
      %p112 = scmp.eq.s32.totalorder %s18, 0
      %p113 = por %p111, %p112
      %p114 = scmp.le.s32.totalorder 1, %s12
      %p115 = scmp.lt.s32.totalorder %s12, 5
      %p116 = pnand %p114, %p115
      %p117 = pneg %p116
      // Predicated region
      $region9: #{tpu_custom_call.1} parent=5 // pred_check
        _
      $region10: #{tpu_custom_call.1} parent=5 // pred_check_branch
        %119 = sbr.rel (%p116) target = $region12
      $region11: #{tpu_custom_call.1} parent=5 // pred_region
        %s120 = ssub.s32 %s12, 1
        // Predicated region
        $region13: #{tpu_custom_call.1} parent=11 // pred_check
          %p121 = pneg %p59
        $region14: #{tpu_custom_call.1} parent=11 // pred_check_branch
          %123 = sbr.rel (%p121) target = $region16
        $region15: #{tpu_custom_call.1} parent=11 // pred_region
          _
        $region16: #{tpu_custom_call.1} parent=11 // pred_fallthru
          _
        // Predicated region
        $region17: #{tpu_custom_call.1} parent=11 // pred_check
          %p124 = pneg %p80
        $region18: #{tpu_custom_call.1} parent=11 // pred_check_branch
          %126 = sbr.rel (%p124) target = $region20
        $region19: #{tpu_custom_call.1} parent=11 // pred_region
          _
        $region20: #{tpu_custom_call.1} parent=11 // pred_fallthru
          _
      $region12: #{tpu_custom_call.1} parent=5 // pred_fallthru
        _
      %p127 = scmp.lt.s32.totalorder %s12, 4
      // Predicated region
      $region21: #{tpu_custom_call.1} parent=5 // pred_check
        %p128 = pneg %p127
      $region22: #{tpu_custom_call.1} parent=5 // pred_check_branch
        %130 = sbr.rel (%p128) target = $region24
      $region23: #{tpu_custom_call.1} parent=5 // pred_region
        // Predicated region
        $region25: #{tpu_custom_call.1} parent=23 // pred_check
          %p131 = pneg %p32
        $region26: #{tpu_custom_call.1} parent=23 // pred_check_branch
          %133 = sbr.rel (%p131) target = $region28
        $region27: #{tpu_custom_call.1} parent=23 // pred_region
          %s134 = smul.u32 7, %s12
          %s135 = ssub.s32 25, %s134
          %p136 = scmp.lt.s32.totalorder %s135, 7
          %s137 = scalar_select %p136, %s135, 7
          %s138 = smul.u32 8, %s137
          %p139 = scmp.lt.s32.totalorder %s134, 24
          %s140 = scalar_select %p139, %s134, 24
          %s141 = smul.addr %s140, 8
          %s142 = scalar_lea.vmem %s0, %s141
          %s143 = smul.u32 7, %s12
          %s144 = ssub.s32 25, %s143
          %p145 = scmp.lt.s32.totalorder %s144, 7
          %s146 = scalar_select %p145, %s144, 7
          %s147 = smul.u32 8, %s146
        $region28: #{tpu_custom_call.1} parent=23 // pred_fallthru
          _
      $region24: #{tpu_custom_call.1} parent=5 // pred_fallthru
        _
      %p148 = scmp.le.s32.totalorder 1, %s12
      %p149 = scmp.lt.s32.totalorder %s12, 5
      %p150 = pnand %p148, %p149
      %p151 = pneg %p150
      // Predicated region
      $region29: #{tpu_custom_call.1} parent=5 // pred_check
        _
      $region30: #{tpu_custom_call.1} parent=5 // pred_check_branch
        %153 = sbr.rel (%p150) target = $region32
      $region31: #{tpu_custom_call.1} parent=5 // pred_region
        %s154 = ssub.s32 %s12, 1
        %s155 = smul.u32 7, %s17
        %s156 = ssub.s32 25, %s155
        %p157 = scmp.lt.s32.totalorder %s156, 7
        %s158 = scalar_select %p157, %s156, 7
        %s159 = smul.u32 8, %s158
        %p160 = scmp.lt.s32.totalorder %s155, 24
        %s161 = scalar_select %p160, %s155, 24
        %s162 = smul.addr %s161, 8
        %s163 = scalar_lea.vmem %s0, %s162
        %p164 = pneg %p38
        %p165 = pneg %p35
        %p166 = pneg %p59
        %p167 = pneg %p56
        %p168 = pneg %p80
        %p169 = pneg %p77
        %p170 = pneg %p106
        %p171 = pneg %p103
        %s172 = sand.u32 %s93, 1
        %s173 = scalar_lea.sflag [#allocation3], %s172
        %s174 = sand.u32 %s93, 1
        %s175 = smul.addr %s174, 56
        %s176 = scalar_lea.vmem [#allocation2], %s175
        %s177 = smul.u32 7, %s17
        %s178 = ssub.s32 25, %s177
        %p179 = scmp.lt.s32.totalorder %s178, 7
        %s180 = scalar_select %p179, %s178, 7
        %s181 = smul.u32 8, %s180
        %p182 = scmp.lt.s32.totalorder %s177, 24
        %s183 = scalar_select %p182, %s177, 24
        %s184 = smul.addr %s183, 8
        %s185 = scalar_lea.vmem %s0, %s184
        %s186 = smul.u32 7, %s17
        %s187 = ssub.s32 25, %s186
        %p188 = scmp.lt.s32.totalorder %s187, 7
        %s189 = scalar_select %p188, %s187, 7
        %s190 = smul.u32 8, %s189
        %s191 = smul.u32 7, %s17
        %s192 = ssub.s32 25, %s191
        %p193 = scmp.lt.s32.totalorder %s192, 7
        %s194 = scalar_select %p193, %s192, 7
        %s195 = smul.u32 8, %s194
        %v196 = vld [vmem:[%s185] sm:$0xff]
        %v197 = vld [vmem:[%s185 + $0x8] sm:$0xff]
        %v198 = vld [vmem:[%s185 + $0x10] sm:$0xff]
        %v199 = vld [vmem:[%s185 + $0x18] sm:$0xff]
        %v200 = vld [vmem:[%s185 + $0x20] sm:$0xff]
        %v201 = vld [vmem:[%s185 + $0x28] sm:$0xff]
        %v202 = vld [vmem:[%s185 + $0x30] sm:$0xff]
        %v203 = vld [vmem:[%s1] sm:$0x1]
        %v204 = vld [vmem:[%s2] sm:$0x1]
        %206 = vset.pattern.permute.xlu0 0
        %207 = vperm.xlu0 %206, %v196
        %v208 = vpop.permute.xlu0 %207
        %211 = vset.pattern.permute.xlu0 0
        %212 = vperm.xlu0 %211, %v197
        %v213 = vpop.permute.xlu0 %212
        %216 = vset.pattern.permute.xlu0 0
        %217 = vperm.xlu0 %216, %v198
        %v218 = vpop.permute.xlu0 %217
        %221 = vset.pattern.permute.xlu0 0
        %222 = vperm.xlu0 %221, %v199
        %v223 = vpop.permute.xlu0 %222
        %226 = vset.pattern.permute.xlu0 0
        %227 = vperm.xlu0 %226, %v200
        %v228 = vpop.permute.xlu0 %227
        %231 = vset.pattern.permute.xlu0 0
        %232 = vperm.xlu0 %231, %v201
        %v233 = vpop.permute.xlu0 %232
        %236 = vset.pattern.permute.xlu0 0
        %237 = vperm.xlu0 %236, %v202
        %v238 = vpop.permute.xlu0 %237
        %v241 = vperm.slane %v203, 0
        %v243 = vmul.f32 %v208, %v241
        %v244 = vmul.f32 %v213, %v241
        %v245 = vmul.f32 %v218, %v241
        %v246 = vmul.f32 %v223, %v241
        %v247 = vmul.f32 %v228, %v241
        %v248 = vmul.f32 %v233, %v241
        %v249 = vmul.f32 %v238, %v241
        %v251 = vperm.slane %v204, 0
        %v253 = vadd.f32 %v243, %v251
        %v254 = vadd.f32 %v244, %v251
        %v255 = vadd.f32 %v245, %v251
        %v256 = vadd.f32 %v246, %v251
        %v257 = vadd.f32 %v247, %v251
        %v258 = vadd.f32 %v248, %v251
        %v259 = vadd.f32 %v249, %v251
        %v260 = vand.u32 2147483647, %v253
        %vm261 = vcmp.le.f32.partialorder %v260, 0.7853982
        %vm262 = vcmp.lt.s32.totalorder %v253, 0
        %v263 = vand.u32 %v253, 2139095040
        %v264 = vshrl.u32 %v263, 23
        %v265 = vsub.s32 %v264, 127
        %v266 = vand.u32 2147483647, %v253
        %v267 = vand.u32 %v266, 8388607
        %v268 = vor.u32 %v267, 8388608
        %v269 = vsub.s32 0, %v268
        %v270 = vadd.s32 %v265, 1
        %vm271 = vcmp.gt.s32.totalorder %v270, 0
        %v272 = vsel %vm271, %v270, 0
        %v273 = vshrl.u32 %v272, 5
        %v274 = vand.u32 %v272, 31
        %v275 = vsub.s32 32, %v274
        %v276 = vshrl.u32 683565275, %v275
        %v277 = vshll.u32 683565275, %v274
        %v278 = vshrl.u32 2475754826, %v275
        %v279 = vor.u32 %v277, %v278
        %v280 = vshll.u32 2475754826, %v274
        %v281 = vshrl.u32 2131351028, %v275
        %v282 = vor.u32 %v280, %v281
        %v283 = vshll.u32 2131351028, %v274
        %v284 = vshrl.u32 2102212464, %v275
        %v285 = vor.u32 %v283, %v284
        %v286 = vshll.u32 2102212464, %v274
        %v287 = vshrl.u32 920167782, %v275
        %v288 = vor.u32 %v286, %v287
        %v289 = vshll.u32 920167782, %v274
        %v290 = vshrl.u32 1326507024, %v275
        %v291 = vor.u32 %v289, %v290
        %vm292 = vcmp.lt.s32.totalorder %v273, 1
        %vm293 = vcmp.lt.s32.totalorder %v273, 2
        %vm294 = vcmp.lt.s32.totalorder %v273, 3
        %vm295 = vcmp.lt.s32.totalorder %v273, 4
        %v296 = vsel %vm292, %v276, %v279
        %v297 = vsel %vm295, %v285, 2102212464
        %v298 = vsel %vm294, %v282, %v297
        %v299 = vsel %vm293, %v296, %v298
        %v300 = vsel %vm292, %v279, %v282
        %v301 = vsel %vm295, %v288, 920167782
        %v302 = vsel %vm294, %v285, %v301
        %v303 = vsel %vm293, %v300, %v302
        %v304 = vsel %vm292, %v282, %v285
        %v305 = vsel %vm295, %v291, 1326507024
        %v306 = vsel %vm294, %v288, %v305
        %v307 = vsel %vm293, %v304, %v306
        %v308 = vshll.u32 %v268, 8
        %v309 = vand.u32 %v308, 65535
        %v310 = vshrl.u32 %v308, 16
        %v311 = vand.u32 %v307, 65535
        %v312 = vshrl.u32 %v307, 16
        %v313 = vmul.u32 %v309, %v311
        %v314 = vmul.u32 %v309, %v312
        %v315 = vmul.u32 %v310, %v311
        %v316 = vmul.u32 %v310, %v312
        %v317 = vshll.u32 %v314, 16
        %v318 = vshrl.u32 %v314, 16
        %v319 = vshll.u32 %v315, 16
        %v320 = vshrl.u32 %v315, 16
        %vm321 = vc.u32 %v313, %v317
        %v322 = vsel %vm321, 1, 0
        %v323 = vadd.s32 %v313, %v317
        %v324 = vadd.s32 %v316, %v322
        %vm325 = vc.u32 %v323, %v319
        %v326 = vsel %vm325, 1, 0
        %v327 = vadd.s32 %v323, %v319
        %v328 = vadd.s32 %v324, %v326
        %v329 = vadd.s32 %v328, %v318
        %v330 = vadd.s32 %v329, %v320
        %v331 = vand.u32 %v308, 65535
        %v332 = vshrl.u32 %v308, 16
        %v333 = vand.u32 %v303, 65535
        %v334 = vshrl.u32 %v303, 16
        %v335 = vmul.u32 %v331, %v333
        %v336 = vmul.u32 %v331, %v334
        %v337 = vmul.u32 %v332, %v333
        %v338 = vmul.u32 %v332, %v334
        %v339 = vshll.u32 %v336, 16
        %v340 = vshrl.u32 %v336, 16
        %v341 = vshll.u32 %v337, 16
        %v342 = vshrl.u32 %v337, 16
        %vm343 = vc.u32 %v335, %v339
        %v344 = vsel %vm343, 1, 0
        %v345 = vadd.s32 %v335, %v339
        %v346 = vadd.s32 %v338, %v344
        %vm347 = vc.u32 %v345, %v341
        %v348 = vsel %vm347, 1, 0
        %v349 = vadd.s32 %v345, %v341
        %v350 = vadd.s32 %v346, %v348
        %v351 = vadd.s32 %v350, %v340
        %v352 = vadd.s32 %v351, %v342
        %v353 = vmul.u32 %v308, %v299
        %v354 = vadd.s32 %v330, %v349
        %vm355 = vc.u32 %v330, %v349
        %v356 = vadd.s32 %v352, 1
        %v357 = vsel %vm355, %v356, %v352
        %v358 = vadd.s32 %v353, %v357
        %v359 = vadd.s32 %v358, 536870912
        %v360 = vshrl.u32 %v359, 30
        %v361 = vshll.u32 %v360, 30
        %v362 = vsub.s32 %v358, %v361
        %vm363 = vcmp.lt.s32.totalorder %v362, 0
        %v364 = vsub.s32 0, %v362
        %v365 = vsel %vm363, %v364, %v362
        %v366 = vclz %v365
        %v367 = vsub.s32 %v366, 2
        %vm368 = vcmp.gt.s32.totalorder 0, %v367
        %v369 = vsel %vm368, 0, %v367
        %v370 = vsub.s32 32, %v369
        %v371 = vshll.u32 %v362, %v369
        %v372 = vshrl.u32 %v354, %v370
        %v373 = vor.u32 %v371, %v372
        %v374 = vsub.s32 4294967266, %v369
        %v375 = vadd.s32 %v374, 127
        %v376 = vshll.u32 %v375, 23
        %v377 = vor.u32 4788187, %v376
        %v378 = vand.u32 2147483647, %v377
        %v380 = vcvt.s32.f32 %v373
        %v381 = vmul.f32 %v380, %v378
        %v382 = vxor.u32 %v381, 2147483648
        %v383 = vsel %vm262, %v382, %v381
        %v384 = vsub.s32 4, %v360
        %v385 = vsel %vm262, %v384, %v360
        %v386 = vsel %vm261, %v253, %v383
        %v387 = vsel %vm261, 0, %v385
        %v388 = vmul.f32 %v386, %v386
        %v389 = vmul.f32 %v388, -0.001358992
        %v390 = vadd.f32 %v389, 0.041655596
        %v391 = vmul.f32 %v388, %v390
        %v392 = vadd.f32 %v391, -0.4999988
        %v393 = vmul.f32 %v388, %v392
        %v394 = vadd.f32 1.0, %v393
        %v395 = vmul.f32 %v386, %v386
        %v396 = vmul.f32 %v395, -0.00019511016
        %v397 = vadd.f32 %v396, 0.008332121
        %v398 = vmul.f32 %v395, %v397
        %v399 = vadd.f32 %v398, -0.16666654
        %v400 = vmul.f32 %v395, %v399
        %v401 = vadd.f32 %v400, 1.0
        %v402 = vmul.f32 %v401, %v386
        %vm403 = vweird.f32 %v253
        %v404 = vand.u32 %v387, 3
        %vm405 = vcmp.lt.s32.totalorder %v404, 2
        %vm406 = vcmp.eq.s32.totalorder %v404, 0
        %v407 = vxor.u32 %v402, 2147483648
        %v408 = vsel %vm406, %v394, %v407
        %vm409 = vcmp.eq.s32.totalorder %v404, 2
        %v410 = vxor.u32 %v394, 2147483648
        %v411 = vsel %vm409, %v410, %v402
        %v412 = vsel %vm405, %v408, %v411
        %v413 = vsel %vm403, nan, %v412
        %v414 = vand.u32 2147483647, %v254
        %vm415 = vcmp.le.f32.partialorder %v414, 0.7853982
        %vm416 = vcmp.lt.s32.totalorder %v254, 0
        %v417 = vand.u32 %v254, 2139095040
        %v418 = vshrl.u32 %v417, 23
        %v419 = vsub.s32 %v418, 127
        %v420 = vand.u32 2147483647, %v254
        %v421 = vand.u32 %v420, 8388607
        %v422 = vor.u32 %v421, 8388608
        %v423 = vsub.s32 0, %v422
        %v424 = vadd.s32 %v419, 1
        %vm425 = vcmp.gt.s32.totalorder %v424, 0
        %v426 = vsel %vm425, %v424, 0
        %v427 = vshrl.u32 %v426, 5
        %v428 = vand.u32 %v426, 31
        %v429 = vsub.s32 32, %v428
        %v430 = vshrl.u32 683565275, %v429
        %v431 = vshll.u32 683565275, %v428
        %v432 = vshrl.u32 2475754826, %v429
        %v433 = vor.u32 %v431, %v432
        %v434 = vshll.u32 2475754826, %v428
        %v435 = vshrl.u32 2131351028, %v429
        %v436 = vor.u32 %v434, %v435
        %v437 = vshll.u32 2131351028, %v428
        %v438 = vshrl.u32 2102212464, %v429
        %v439 = vor.u32 %v437, %v438
        %v440 = vshll.u32 2102212464, %v428
        %v441 = vshrl.u32 920167782, %v429
        %v442 = vor.u32 %v440, %v441
        %v443 = vshll.u32 920167782, %v428
        %v444 = vshrl.u32 1326507024, %v429
        %v445 = vor.u32 %v443, %v444
        %vm446 = vcmp.lt.s32.totalorder %v427, 1
        %vm447 = vcmp.lt.s32.totalorder %v427, 2
        %vm448 = vcmp.lt.s32.totalorder %v427, 3
        %vm449 = vcmp.lt.s32.totalorder %v427, 4
        %v450 = vsel %vm446, %v430, %v433
        %v451 = vsel %vm449, %v439, 2102212464
        %v452 = vsel %vm448, %v436, %v451
        %v453 = vsel %vm447, %v450, %v452
        %v454 = vsel %vm446, %v433, %v436
        %v455 = vsel %vm449, %v442, 920167782
        %v456 = vsel %vm448, %v439, %v455
        %v457 = vsel %vm447, %v454, %v456
        %v458 = vsel %vm446, %v436, %v439
        %v459 = vsel %vm449, %v445, 1326507024
        %v460 = vsel %vm448, %v442, %v459
        %v461 = vsel %vm447, %v458, %v460
        %v462 = vshll.u32 %v422, 8
        %v463 = vand.u32 %v462, 65535
        %v464 = vshrl.u32 %v462, 16
        %v465 = vand.u32 %v461, 65535
        %v466 = vshrl.u32 %v461, 16
        %v467 = vmul.u32 %v463, %v465
        %v468 = vmul.u32 %v463, %v466
        %v469 = vmul.u32 %v464, %v465
        %v470 = vmul.u32 %v464, %v466
        %v471 = vshll.u32 %v468, 16
        %v472 = vshrl.u32 %v468, 16
        %v473 = vshll.u32 %v469, 16
        %v474 = vshrl.u32 %v469, 16
        %vm475 = vc.u32 %v467, %v471
        %v476 = vsel %vm475, 1, 0
        %v477 = vadd.s32 %v467, %v471
        %v478 = vadd.s32 %v470, %v476
        %vm479 = vc.u32 %v477, %v473
        %v480 = vsel %vm479, 1, 0
        %v481 = vadd.s32 %v477, %v473
        %v482 = vadd.s32 %v478, %v480
        %v483 = vadd.s32 %v482, %v472
        %v484 = vadd.s32 %v483, %v474
        %v485 = vand.u32 %v462, 65535
        %v486 = vshrl.u32 %v462, 16
        %v487 = vand.u32 %v457, 65535
        %v488 = vshrl.u32 %v457, 16
        %v489 = vmul.u32 %v485, %v487
        %v490 = vmul.u32 %v485, %v488
        %v491 = vmul.u32 %v486, %v487
        %v492 = vmul.u32 %v486, %v488
        %v493 = vshll.u32 %v490, 16
        %v494 = vshrl.u32 %v490, 16
        %v495 = vshll.u32 %v491, 16
        %v496 = vshrl.u32 %v491, 16
        %vm497 = vc.u32 %v489, %v493
        %v498 = vsel %vm497, 1, 0
        %v499 = vadd.s32 %v489, %v493
        %v500 = vadd.s32 %v492, %v498
        %vm501 = vc.u32 %v499, %v495
        %v502 = vsel %vm501, 1, 0
        %v503 = vadd.s32 %v499, %v495
        %v504 = vadd.s32 %v500, %v502
        %v505 = vadd.s32 %v504, %v494
        %v506 = vadd.s32 %v505, %v496
        %v507 = vmul.u32 %v462, %v453
        %v508 = vadd.s32 %v484, %v503
        %vm509 = vc.u32 %v484, %v503
        %v510 = vadd.s32 %v506, 1
        %v511 = vsel %vm509, %v510, %v506
        %v512 = vadd.s32 %v507, %v511
        %v513 = vadd.s32 %v512, 536870912
        %v514 = vshrl.u32 %v513, 30
        %v515 = vshll.u32 %v514, 30
        %v516 = vsub.s32 %v512, %v515
        %vm517 = vcmp.lt.s32.totalorder %v516, 0
        %v518 = vsub.s32 0, %v516
        %v519 = vsel %vm517, %v518, %v516
        %v520 = vclz %v519
        %v521 = vsub.s32 %v520, 2
        %vm522 = vcmp.gt.s32.totalorder 0, %v521
        %v523 = vsel %vm522, 0, %v521
        %v524 = vsub.s32 32, %v523
        %v525 = vshll.u32 %v516, %v523
        %v526 = vshrl.u32 %v508, %v524
        %v527 = vor.u32 %v525, %v526
        %v528 = vsub.s32 4294967266, %v523
        %v529 = vadd.s32 %v528, 127
        %v530 = vshll.u32 %v529, 23
        %v531 = vor.u32 4788187, %v530
        %v532 = vand.u32 2147483647, %v531
        %v534 = vcvt.s32.f32 %v527
        %v535 = vmul.f32 %v534, %v532
        %v536 = vxor.u32 %v535, 2147483648
        %v537 = vsel %vm416, %v536, %v535
        %v538 = vsub.s32 4, %v514
        %v539 = vsel %vm416, %v538, %v514
        %v540 = vsel %vm415, %v254, %v537
        %v541 = vsel %vm415, 0, %v539
        %v542 = vmul.f32 %v540, %v540
        %v543 = vmul.f32 %v542, -0.001358992
        %v544 = vadd.f32 %v543, 0.041655596
        %v545 = vmul.f32 %v542, %v544
        %v546 = vadd.f32 %v545, -0.4999988
        %v547 = vmul.f32 %v542, %v546
        %v548 = vadd.f32 1.0, %v547
        %v549 = vmul.f32 %v540, %v540
        %v550 = vmul.f32 %v549, -0.00019511016
        %v551 = vadd.f32 %v550, 0.008332121
        %v552 = vmul.f32 %v549, %v551
        %v553 = vadd.f32 %v552, -0.16666654
        %v554 = vmul.f32 %v549, %v553
        %v555 = vadd.f32 %v554, 1.0
        %v556 = vmul.f32 %v555, %v540
        %vm557 = vweird.f32 %v254
        %v558 = vand.u32 %v541, 3
        %vm559 = vcmp.lt.s32.totalorder %v558, 2
        %vm560 = vcmp.eq.s32.totalorder %v558, 0
        %v561 = vxor.u32 %v556, 2147483648
        %v562 = vsel %vm560, %v548, %v561
        %vm563 = vcmp.eq.s32.totalorder %v558, 2
        %v564 = vxor.u32 %v548, 2147483648
        %v565 = vsel %vm563, %v564, %v556
        %v566 = vsel %vm559, %v562, %v565
        %v567 = vsel %vm557, nan, %v566
        %v568 = vand.u32 2147483647, %v255
        %vm569 = vcmp.le.f32.partialorder %v568, 0.7853982
        %vm570 = vcmp.lt.s32.totalorder %v255, 0
        %v571 = vand.u32 %v255, 2139095040
        %v572 = vshrl.u32 %v571, 23
        %v573 = vsub.s32 %v572, 127
        %v574 = vand.u32 2147483647, %v255
        %v575 = vand.u32 %v574, 8388607
        %v576 = vor.u32 %v575, 8388608
        %v577 = vsub.s32 0, %v576
        %v578 = vadd.s32 %v573, 1
        %vm579 = vcmp.gt.s32.totalorder %v578, 0
        %v580 = vsel %vm579, %v578, 0
        %v581 = vshrl.u32 %v580, 5
        %v582 = vand.u32 %v580, 31
        %v583 = vsub.s32 32, %v582
        %v584 = vshrl.u32 683565275, %v583
        %v585 = vshll.u32 683565275, %v582
        %v586 = vshrl.u32 2475754826, %v583
        %v587 = vor.u32 %v585, %v586
        %v588 = vshll.u32 2475754826, %v582
        %v589 = vshrl.u32 2131351028, %v583
        %v590 = vor.u32 %v588, %v589
        %v591 = vshll.u32 2131351028, %v582
        %v592 = vshrl.u32 2102212464, %v583
        %v593 = vor.u32 %v591, %v592
        %v594 = vshll.u32 2102212464, %v582
        %v595 = vshrl.u32 920167782, %v583
        %v596 = vor.u32 %v594, %v595
        %v597 = vshll.u32 920167782, %v582
        %v598 = vshrl.u32 1326507024, %v583
        %v599 = vor.u32 %v597, %v598
        %vm600 = vcmp.lt.s32.totalorder %v581, 1
        %vm601 = vcmp.lt.s32.totalorder %v581, 2
        %vm602 = vcmp.lt.s32.totalorder %v581, 3
        %vm603 = vcmp.lt.s32.totalorder %v581, 4
        %v604 = vsel %vm600, %v584, %v587
        %v605 = vsel %vm603, %v593, 2102212464
        %v606 = vsel %vm602, %v590, %v605
        %v607 = vsel %vm601, %v604, %v606
        %v608 = vsel %vm600, %v587, %v590
        %v609 = vsel %vm603, %v596, 920167782
        %v610 = vsel %vm602, %v593, %v609
        %v611 = vsel %vm601, %v608, %v610
        %v612 = vsel %vm600, %v590, %v593
        %v613 = vsel %vm603, %v599, 1326507024
        %v614 = vsel %vm602, %v596, %v613
        %v615 = vsel %vm601, %v612, %v614
        %v616 = vshll.u32 %v576, 8
        %v617 = vand.u32 %v616, 65535
        %v618 = vshrl.u32 %v616, 16
        %v619 = vand.u32 %v615, 65535
        %v620 = vshrl.u32 %v615, 16
        %v621 = vmul.u32 %v617, %v619
        %v622 = vmul.u32 %v617, %v620
        %v623 = vmul.u32 %v618, %v619
        %v624 = vmul.u32 %v618, %v620
        %v625 = vshll.u32 %v622, 16
        %v626 = vshrl.u32 %v622, 16
        %v627 = vshll.u32 %v623, 16
        %v628 = vshrl.u32 %v623, 16
        %vm629 = vc.u32 %v621, %v625
        %v630 = vsel %vm629, 1, 0
        %v631 = vadd.s32 %v621, %v625
        %v632 = vadd.s32 %v624, %v630
        %vm633 = vc.u32 %v631, %v627
        %v634 = vsel %vm633, 1, 0
        %v635 = vadd.s32 %v631, %v627
        %v636 = vadd.s32 %v632, %v634
        %v637 = vadd.s32 %v636, %v626
        %v638 = vadd.s32 %v637, %v628
        %v639 = vand.u32 %v616, 65535
        %v640 = vshrl.u32 %v616, 16
        %v641 = vand.u32 %v611, 65535
        %v642 = vshrl.u32 %v611, 16
        %v643 = vmul.u32 %v639, %v641
        %v644 = vmul.u32 %v639, %v642
        %v645 = vmul.u32 %v640, %v641
        %v646 = vmul.u32 %v640, %v642
        %v647 = vshll.u32 %v644, 16
        %v648 = vshrl.u32 %v644, 16
        %v649 = vshll.u32 %v645, 16
        %v650 = vshrl.u32 %v645, 16
        %vm651 = vc.u32 %v643, %v647
        %v652 = vsel %vm651, 1, 0
        %v653 = vadd.s32 %v643, %v647
        %v654 = vadd.s32 %v646, %v652
        %vm655 = vc.u32 %v653, %v649
        %v656 = vsel %vm655, 1, 0
        %v657 = vadd.s32 %v653, %v649
        %v658 = vadd.s32 %v654, %v656
        %v659 = vadd.s32 %v658, %v648
        %v660 = vadd.s32 %v659, %v650
        %v661 = vmul.u32 %v616, %v607
        %v662 = vadd.s32 %v638, %v657
        %vm663 = vc.u32 %v638, %v657
        %v664 = vadd.s32 %v660, 1
        %v665 = vsel %vm663, %v664, %v660
        %v666 = vadd.s32 %v661, %v665
        %v667 = vadd.s32 %v666, 536870912
        %v668 = vshrl.u32 %v667, 30
        %v669 = vshll.u32 %v668, 30
        %v670 = vsub.s32 %v666, %v669
        %vm671 = vcmp.lt.s32.totalorder %v670, 0
        %v672 = vsub.s32 0, %v670
        %v673 = vsel %vm671, %v672, %v670
        %v674 = vclz %v673
        %v675 = vsub.s32 %v674, 2
        %vm676 = vcmp.gt.s32.totalorder 0, %v675
        %v677 = vsel %vm676, 0, %v675
        %v678 = vsub.s32 32, %v677
        %v679 = vshll.u32 %v670, %v677
        %v680 = vshrl.u32 %v662, %v678
        %v681 = vor.u32 %v679, %v680
        %v682 = vsub.s32 4294967266, %v677
        %v683 = vadd.s32 %v682, 127
        %v684 = vshll.u32 %v683, 23
        %v685 = vor.u32 4788187, %v684
        %v686 = vand.u32 2147483647, %v685
        %v688 = vcvt.s32.f32 %v681
        %v689 = vmul.f32 %v688, %v686
        %v690 = vxor.u32 %v689, 2147483648
        %v691 = vsel %vm570, %v690, %v689
        %v692 = vsub.s32 4, %v668
        %v693 = vsel %vm570, %v692, %v668
        %v694 = vsel %vm569, %v255, %v691
        %v695 = vsel %vm569, 0, %v693
        %v696 = vmul.f32 %v694, %v694
        %v697 = vmul.f32 %v696, -0.001358992
        %v698 = vadd.f32 %v697, 0.041655596
        %v699 = vmul.f32 %v696, %v698
        %v700 = vadd.f32 %v699, -0.4999988
        %v701 = vmul.f32 %v696, %v700
        %v702 = vadd.f32 1.0, %v701
        %v703 = vmul.f32 %v694, %v694
        %v704 = vmul.f32 %v703, -0.00019511016
        %v705 = vadd.f32 %v704, 0.008332121
        %v706 = vmul.f32 %v703, %v705
        %v707 = vadd.f32 %v706, -0.16666654
        %v708 = vmul.f32 %v703, %v707
        %v709 = vadd.f32 %v708, 1.0
        %v710 = vmul.f32 %v709, %v694
        %vm711 = vweird.f32 %v255
        %v712 = vand.u32 %v695, 3
        %vm713 = vcmp.lt.s32.totalorder %v712, 2
        %vm714 = vcmp.eq.s32.totalorder %v712, 0
        %v715 = vxor.u32 %v710, 2147483648
        %v716 = vsel %vm714, %v702, %v715
        %vm717 = vcmp.eq.s32.totalorder %v712, 2
        %v718 = vxor.u32 %v702, 2147483648
        %v719 = vsel %vm717, %v718, %v710
        %v720 = vsel %vm713, %v716, %v719
        %v721 = vsel %vm711, nan, %v720
        %v722 = vand.u32 2147483647, %v256
        %vm723 = vcmp.le.f32.partialorder %v722, 0.7853982
        %vm724 = vcmp.lt.s32.totalorder %v256, 0
        %v725 = vand.u32 %v256, 2139095040
        %v726 = vshrl.u32 %v725, 23
        %v727 = vsub.s32 %v726, 127
        %v728 = vand.u32 2147483647, %v256
        %v729 = vand.u32 %v728, 8388607
        %v730 = vor.u32 %v729, 8388608
        %v731 = vsub.s32 0, %v730
        %v732 = vadd.s32 %v727, 1
        %vm733 = vcmp.gt.s32.totalorder %v732, 0
        %v734 = vsel %vm733, %v732, 0
        %v735 = vshrl.u32 %v734, 5
        %v736 = vand.u32 %v734, 31
        %v737 = vsub.s32 32, %v736
        %v738 = vshrl.u32 683565275, %v737
        %v739 = vshll.u32 683565275, %v736
        %v740 = vshrl.u32 2475754826, %v737
        %v741 = vor.u32 %v739, %v740
        %v742 = vshll.u32 2475754826, %v736
        %v743 = vshrl.u32 2131351028, %v737
        %v744 = vor.u32 %v742, %v743
        %v745 = vshll.u32 2131351028, %v736
        %v746 = vshrl.u32 2102212464, %v737
        %v747 = vor.u32 %v745, %v746
        %v748 = vshll.u32 2102212464, %v736
        %v749 = vshrl.u32 920167782, %v737
        %v750 = vor.u32 %v748, %v749
        %v751 = vshll.u32 920167782, %v736
        %v752 = vshrl.u32 1326507024, %v737
        %v753 = vor.u32 %v751, %v752
        %vm754 = vcmp.lt.s32.totalorder %v735, 1
        %vm755 = vcmp.lt.s32.totalorder %v735, 2
        %vm756 = vcmp.lt.s32.totalorder %v735, 3
        %vm757 = vcmp.lt.s32.totalorder %v735, 4
        %v758 = vsel %vm754, %v738, %v741
        %v759 = vsel %vm757, %v747, 2102212464
        %v760 = vsel %vm756, %v744, %v759
        %v761 = vsel %vm755, %v758, %v760
        %v762 = vsel %vm754, %v741, %v744
        %v763 = vsel %vm757, %v750, 920167782
        %v764 = vsel %vm756, %v747, %v763
        %v765 = vsel %vm755, %v762, %v764
        %v766 = vsel %vm754, %v744, %v747
        %v767 = vsel %vm757, %v753, 1326507024
        %v768 = vsel %vm756, %v750, %v767
        %v769 = vsel %vm755, %v766, %v768
        %v770 = vshll.u32 %v730, 8
        %v771 = vand.u32 %v770, 65535
        %v772 = vshrl.u32 %v770, 16
        %v773 = vand.u32 %v769, 65535
        %v774 = vshrl.u32 %v769, 16
        %v775 = vmul.u32 %v771, %v773
        %v776 = vmul.u32 %v771, %v774
        %v777 = vmul.u32 %v772, %v773
        %v778 = vmul.u32 %v772, %v774
        %v779 = vshll.u32 %v776, 16
        %v780 = vshrl.u32 %v776, 16
        %v781 = vshll.u32 %v777, 16
        %v782 = vshrl.u32 %v777, 16
        %vm783 = vc.u32 %v775, %v779
        %v784 = vsel %vm783, 1, 0
        %v785 = vadd.s32 %v775, %v779
        %v786 = vadd.s32 %v778, %v784
        %vm787 = vc.u32 %v785, %v781
        %v788 = vsel %vm787, 1, 0
        %v789 = vadd.s32 %v785, %v781
        %v790 = vadd.s32 %v786, %v788
        %v791 = vadd.s32 %v790, %v780
        %v792 = vadd.s32 %v791, %v782
        %v793 = vand.u32 %v770, 65535
        %v794 = vshrl.u32 %v770, 16
        %v795 = vand.u32 %v765, 65535
        %v796 = vshrl.u32 %v765, 16
        %v797 = vmul.u32 %v793, %v795
        %v798 = vmul.u32 %v793, %v796
        %v799 = vmul.u32 %v794, %v795
        %v800 = vmul.u32 %v794, %v796
        %v801 = vshll.u32 %v798, 16
        %v802 = vshrl.u32 %v798, 16
        %v803 = vshll.u32 %v799, 16
        %v804 = vshrl.u32 %v799, 16
        %vm805 = vc.u32 %v797, %v801
        %v806 = vsel %vm805, 1, 0
        %v807 = vadd.s32 %v797, %v801
        %v808 = vadd.s32 %v800, %v806
        %vm809 = vc.u32 %v807, %v803
        %v810 = vsel %vm809, 1, 0
        %v811 = vadd.s32 %v807, %v803
        %v812 = vadd.s32 %v808, %v810
        %v813 = vadd.s32 %v812, %v802
        %v814 = vadd.s32 %v813, %v804
        %v815 = vmul.u32 %v770, %v761
        %v816 = vadd.s32 %v792, %v811
        %vm817 = vc.u32 %v792, %v811
        %v818 = vadd.s32 %v814, 1
        %v819 = vsel %vm817, %v818, %v814
        %v820 = vadd.s32 %v815, %v819
        %v821 = vadd.s32 %v820, 536870912
        %v822 = vshrl.u32 %v821, 30
        %v823 = vshll.u32 %v822, 30
        %v824 = vsub.s32 %v820, %v823
        %vm825 = vcmp.lt.s32.totalorder %v824, 0
        %v826 = vsub.s32 0, %v824
        %v827 = vsel %vm825, %v826, %v824
        %v828 = vclz %v827
        %v829 = vsub.s32 %v828, 2
        %vm830 = vcmp.gt.s32.totalorder 0, %v829
        %v831 = vsel %vm830, 0, %v829
        %v832 = vsub.s32 32, %v831
        %v833 = vshll.u32 %v824, %v831
        %v834 = vshrl.u32 %v816, %v832
        %v835 = vor.u32 %v833, %v834
        %v836 = vsub.s32 4294967266, %v831
        %v837 = vadd.s32 %v836, 127
        %v838 = vshll.u32 %v837, 23
        %v839 = vor.u32 4788187, %v838
        %v840 = vand.u32 2147483647, %v839
        %v842 = vcvt.s32.f32 %v835
        %v843 = vmul.f32 %v842, %v840
        %v844 = vxor.u32 %v843, 2147483648
        %v845 = vsel %vm724, %v844, %v843
        %v846 = vsub.s32 4, %v822
        %v847 = vsel %vm724, %v846, %v822
        %v848 = vsel %vm723, %v256, %v845
        %v849 = vsel %vm723, 0, %v847
        %v850 = vmul.f32 %v848, %v848
        %v851 = vmul.f32 %v850, -0.001358992
        %v852 = vadd.f32 %v851, 0.041655596
        %v853 = vmul.f32 %v850, %v852
        %v854 = vadd.f32 %v853, -0.4999988
        %v855 = vmul.f32 %v850, %v854
        %v856 = vadd.f32 1.0, %v855
        %v857 = vmul.f32 %v848, %v848
        %v858 = vmul.f32 %v857, -0.00019511016
        %v859 = vadd.f32 %v858, 0.008332121
        %v860 = vmul.f32 %v857, %v859
        %v861 = vadd.f32 %v860, -0.16666654
        %v862 = vmul.f32 %v857, %v861
        %v863 = vadd.f32 %v862, 1.0
        %v864 = vmul.f32 %v863, %v848
        %vm865 = vweird.f32 %v256
        %v866 = vand.u32 %v849, 3
        %vm867 = vcmp.lt.s32.totalorder %v866, 2
        %vm868 = vcmp.eq.s32.totalorder %v866, 0
        %v869 = vxor.u32 %v864, 2147483648
        %v870 = vsel %vm868, %v856, %v869
        %vm871 = vcmp.eq.s32.totalorder %v866, 2
        %v872 = vxor.u32 %v856, 2147483648
        %v873 = vsel %vm871, %v872, %v864
        %v874 = vsel %vm867, %v870, %v873
        %v875 = vsel %vm865, nan, %v874
        %v876 = vand.u32 2147483647, %v257
        %vm877 = vcmp.le.f32.partialorder %v876, 0.7853982
        %vm878 = vcmp.lt.s32.totalorder %v257, 0
        %v879 = vand.u32 %v257, 2139095040
        %v880 = vshrl.u32 %v879, 23
        %v881 = vsub.s32 %v880, 127
        %v882 = vand.u32 2147483647, %v257
        %v883 = vand.u32 %v882, 8388607
        %v884 = vor.u32 %v883, 8388608
        %v885 = vsub.s32 0, %v884
        %v886 = vadd.s32 %v881, 1
        %vm887 = vcmp.gt.s32.totalorder %v886, 0
        %v888 = vsel %vm887, %v886, 0
        %v889 = vshrl.u32 %v888, 5
        %v890 = vand.u32 %v888, 31
        %v891 = vsub.s32 32, %v890
        %v892 = vshrl.u32 683565275, %v891
        %v893 = vshll.u32 683565275, %v890
        %v894 = vshrl.u32 2475754826, %v891
        %v895 = vor.u32 %v893, %v894
        %v896 = vshll.u32 2475754826, %v890
        %v897 = vshrl.u32 2131351028, %v891
        %v898 = vor.u32 %v896, %v897
        %v899 = vshll.u32 2131351028, %v890
        %v900 = vshrl.u32 2102212464, %v891
        %v901 = vor.u32 %v899, %v900
        %v902 = vshll.u32 2102212464, %v890
        %v903 = vshrl.u32 920167782, %v891
        %v904 = vor.u32 %v902, %v903
        %v905 = vshll.u32 920167782, %v890
        %v906 = vshrl.u32 1326507024, %v891
        %v907 = vor.u32 %v905, %v906
        %vm908 = vcmp.lt.s32.totalorder %v889, 1
        %vm909 = vcmp.lt.s32.totalorder %v889, 2
        %vm910 = vcmp.lt.s32.totalorder %v889, 3
        %vm911 = vcmp.lt.s32.totalorder %v889, 4
        %v912 = vsel %vm908, %v892, %v895
        %v913 = vsel %vm911, %v901, 2102212464
        %v914 = vsel %vm910, %v898, %v913
        %v915 = vsel %vm909, %v912, %v914
        %v916 = vsel %vm908, %v895, %v898
        %v917 = vsel %vm911, %v904, 920167782
        %v918 = vsel %vm910, %v901, %v917
        %v919 = vsel %vm909, %v916, %v918
        %v920 = vsel %vm908, %v898, %v901
        %v921 = vsel %vm911, %v907, 1326507024
        %v922 = vsel %vm910, %v904, %v921
        %v923 = vsel %vm909, %v920, %v922
        %v924 = vshll.u32 %v884, 8
        %v925 = vand.u32 %v924, 65535
        %v926 = vshrl.u32 %v924, 16
        %v927 = vand.u32 %v923, 65535
        %v928 = vshrl.u32 %v923, 16
        %v929 = vmul.u32 %v925, %v927
        %v930 = vmul.u32 %v925, %v928
        %v931 = vmul.u32 %v926, %v927
        %v932 = vmul.u32 %v926, %v928
        %v933 = vshll.u32 %v930, 16
        %v934 = vshrl.u32 %v930, 16
        %v935 = vshll.u32 %v931, 16
        %v936 = vshrl.u32 %v931, 16
        %vm937 = vc.u32 %v929, %v933
        %v938 = vsel %vm937, 1, 0
        %v939 = vadd.s32 %v929, %v933
        %v940 = vadd.s32 %v932, %v938
        %vm941 = vc.u32 %v939, %v935
        %v942 = vsel %vm941, 1, 0
        %v943 = vadd.s32 %v939, %v935
        %v944 = vadd.s32 %v940, %v942
        %v945 = vadd.s32 %v944, %v934
        %v946 = vadd.s32 %v945, %v936
        %v947 = vand.u32 %v924, 65535
        %v948 = vshrl.u32 %v924, 16
        %v949 = vand.u32 %v919, 65535
        %v950 = vshrl.u32 %v919, 16
        %v951 = vmul.u32 %v947, %v949
        %v952 = vmul.u32 %v947, %v950
        %v953 = vmul.u32 %v948, %v949
        %v954 = vmul.u32 %v948, %v950
        %v955 = vshll.u32 %v952, 16
        %v956 = vshrl.u32 %v952, 16
        %v957 = vshll.u32 %v953, 16
        %v958 = vshrl.u32 %v953, 16
        %vm959 = vc.u32 %v951, %v955
        %v960 = vsel %vm959, 1, 0
        %v961 = vadd.s32 %v951, %v955
        %v962 = vadd.s32 %v954, %v960
        %vm963 = vc.u32 %v961, %v957
        %v964 = vsel %vm963, 1, 0
        %v965 = vadd.s32 %v961, %v957
        %v966 = vadd.s32 %v962, %v964
        %v967 = vadd.s32 %v966, %v956
        %v968 = vadd.s32 %v967, %v958
        %v969 = vmul.u32 %v924, %v915
        %v970 = vadd.s32 %v946, %v965
        %vm971 = vc.u32 %v946, %v965
        %v972 = vadd.s32 %v968, 1
        %v973 = vsel %vm971, %v972, %v968
        %v974 = vadd.s32 %v969, %v973
        %v975 = vadd.s32 %v974, 536870912
        %v976 = vshrl.u32 %v975, 30
        %v977 = vshll.u32 %v976, 30
        %v978 = vsub.s32 %v974, %v977
        %vm979 = vcmp.lt.s32.totalorder %v978, 0
        %v980 = vsub.s32 0, %v978
        %v981 = vsel %vm979, %v980, %v978
        %v982 = vclz %v981
        %v983 = vsub.s32 %v982, 2
        %vm984 = vcmp.gt.s32.totalorder 0, %v983
        %v985 = vsel %vm984, 0, %v983
        %v986 = vsub.s32 32, %v985
        %v987 = vshll.u32 %v978, %v985
        %v988 = vshrl.u32 %v970, %v986
        %v989 = vor.u32 %v987, %v988
        %v990 = vsub.s32 4294967266, %v985
        %v991 = vadd.s32 %v990, 127
        %v992 = vshll.u32 %v991, 23
        %v993 = vor.u32 4788187, %v992
        %v994 = vand.u32 2147483647, %v993
        %v996 = vcvt.s32.f32 %v989
        %v997 = vmul.f32 %v996, %v994
        %v998 = vxor.u32 %v997, 2147483648
        %v999 = vsel %vm878, %v998, %v997
        %v1000 = vsub.s32 4, %v976
        %v1001 = vsel %vm878, %v1000, %v976
        %v1002 = vsel %vm877, %v257, %v999
        %v1003 = vsel %vm877, 0, %v1001
        %v1004 = vmul.f32 %v1002, %v1002
        %v1005 = vmul.f32 %v1004, -0.001358992
        %v1006 = vadd.f32 %v1005, 0.041655596
        %v1007 = vmul.f32 %v1004, %v1006
        %v1008 = vadd.f32 %v1007, -0.4999988
        %v1009 = vmul.f32 %v1004, %v1008
        %v1010 = vadd.f32 1.0, %v1009
        %v1011 = vmul.f32 %v1002, %v1002
        %v1012 = vmul.f32 %v1011, -0.00019511016
        %v1013 = vadd.f32 %v1012, 0.008332121
        %v1014 = vmul.f32 %v1011, %v1013
        %v1015 = vadd.f32 %v1014, -0.16666654
        %v1016 = vmul.f32 %v1011, %v1015
        %v1017 = vadd.f32 %v1016, 1.0
        %v1018 = vmul.f32 %v1017, %v1002
        %vm1019 = vweird.f32 %v257
        %v1020 = vand.u32 %v1003, 3
        %vm1021 = vcmp.lt.s32.totalorder %v1020, 2
        %vm1022 = vcmp.eq.s32.totalorder %v1020, 0
        %v1023 = vxor.u32 %v1018, 2147483648
        %v1024 = vsel %vm1022, %v1010, %v1023
        %vm1025 = vcmp.eq.s32.totalorder %v1020, 2
        %v1026 = vxor.u32 %v1010, 2147483648
        %v1027 = vsel %vm1025, %v1026, %v1018
        %v1028 = vsel %vm1021, %v1024, %v1027
        %v1029 = vsel %vm1019, nan, %v1028
        %v1030 = vand.u32 2147483647, %v258
        %vm1031 = vcmp.le.f32.partialorder %v1030, 0.7853982
        %vm1032 = vcmp.lt.s32.totalorder %v258, 0
        %v1033 = vand.u32 %v258, 2139095040
        %v1034 = vshrl.u32 %v1033, 23
        %v1035 = vsub.s32 %v1034, 127
        %v1036 = vand.u32 2147483647, %v258
        %v1037 = vand.u32 %v1036, 8388607
        %v1038 = vor.u32 %v1037, 8388608
        %v1039 = vsub.s32 0, %v1038
        %v1040 = vadd.s32 %v1035, 1
        %vm1041 = vcmp.gt.s32.totalorder %v1040, 0
        %v1042 = vsel %vm1041, %v1040, 0
        %v1043 = vshrl.u32 %v1042, 5
        %v1044 = vand.u32 %v1042, 31
        %v1045 = vsub.s32 32, %v1044
        %v1046 = vshrl.u32 683565275, %v1045
        %v1047 = vshll.u32 683565275, %v1044
        %v1048 = vshrl.u32 2475754826, %v1045
        %v1049 = vor.u32 %v1047, %v1048
        %v1050 = vshll.u32 2475754826, %v1044
        %v1051 = vshrl.u32 2131351028, %v1045
        %v1052 = vor.u32 %v1050, %v1051
        %v1053 = vshll.u32 2131351028, %v1044
        %v1054 = vshrl.u32 2102212464, %v1045
        %v1055 = vor.u32 %v1053, %v1054
        %v1056 = vshll.u32 2102212464, %v1044
        %v1057 = vshrl.u32 920167782, %v1045
        %v1058 = vor.u32 %v1056, %v1057
        %v1059 = vshll.u32 920167782, %v1044
        %v1060 = vshrl.u32 1326507024, %v1045
        %v1061 = vor.u32 %v1059, %v1060
        %vm1062 = vcmp.lt.s32.totalorder %v1043, 1
        %vm1063 = vcmp.lt.s32.totalorder %v1043, 2
        %vm1064 = vcmp.lt.s32.totalorder %v1043, 3
        %vm1065 = vcmp.lt.s32.totalorder %v1043, 4
        %v1066 = vsel %vm1062, %v1046, %v1049
        %v1067 = vsel %vm1065, %v1055, 2102212464
        %v1068 = vsel %vm1064, %v1052, %v1067
        %v1069 = vsel %vm1063, %v1066, %v1068
        %v1070 = vsel %vm1062, %v1049, %v1052
        %v1071 = vsel %vm1065, %v1058, 920167782
        %v1072 = vsel %vm1064, %v1055, %v1071
        %v1073 = vsel %vm1063, %v1070, %v1072
        %v1074 = vsel %vm1062, %v1052, %v1055
        %v1075 = vsel %vm1065, %v1061, 1326507024
        %v1076 = vsel %vm1064, %v1058, %v1075
        %v1077 = vsel %vm1063, %v1074, %v1076
        %v1078 = vshll.u32 %v1038, 8
        %v1079 = vand.u32 %v1078, 65535
        %v1080 = vshrl.u32 %v1078, 16
        %v1081 = vand.u32 %v1077, 65535
        %v1082 = vshrl.u32 %v1077, 16
        %v1083 = vmul.u32 %v1079, %v1081
        %v1084 = vmul.u32 %v1079, %v1082
        %v1085 = vmul.u32 %v1080, %v1081
        %v1086 = vmul.u32 %v1080, %v1082
        %v1087 = vshll.u32 %v1084, 16
        %v1088 = vshrl.u32 %v1084, 16
        %v1089 = vshll.u32 %v1085, 16
        %v1090 = vshrl.u32 %v1085, 16
        %vm1091 = vc.u32 %v1083, %v1087
        %v1092 = vsel %vm1091, 1, 0
        %v1093 = vadd.s32 %v1083, %v1087
        %v1094 = vadd.s32 %v1086, %v1092
        %vm1095 = vc.u32 %v1093, %v1089
        %v1096 = vsel %vm1095, 1, 0
        %v1097 = vadd.s32 %v1093, %v1089
        %v1098 = vadd.s32 %v1094, %v1096
        %v1099 = vadd.s32 %v1098, %v1088
        %v1100 = vadd.s32 %v1099, %v1090
        %v1101 = vand.u32 %v1078, 65535
        %v1102 = vshrl.u32 %v1078, 16
        %v1103 = vand.u32 %v1073, 65535
        %v1104 = vshrl.u32 %v1073, 16
        %v1105 = vmul.u32 %v1101, %v1103
        %v1106 = vmul.u32 %v1101, %v1104
        %v1107 = vmul.u32 %v1102, %v1103
        %v1108 = vmul.u32 %v1102, %v1104
        %v1109 = vshll.u32 %v1106, 16
        %v1110 = vshrl.u32 %v1106, 16
        %v1111 = vshll.u32 %v1107, 16
        %v1112 = vshrl.u32 %v1107, 16
        %vm1113 = vc.u32 %v1105, %v1109
        %v1114 = vsel %vm1113, 1, 0
        %v1115 = vadd.s32 %v1105, %v1109
        %v1116 = vadd.s32 %v1108, %v1114
        %vm1117 = vc.u32 %v1115, %v1111
        %v1118 = vsel %vm1117, 1, 0
        %v1119 = vadd.s32 %v1115, %v1111
        %v1120 = vadd.s32 %v1116, %v1118
        %v1121 = vadd.s32 %v1120, %v1110
        %v1122 = vadd.s32 %v1121, %v1112
        %v1123 = vmul.u32 %v1078, %v1069
        %v1124 = vadd.s32 %v1100, %v1119
        %vm1125 = vc.u32 %v1100, %v1119
        %v1126 = vadd.s32 %v1122, 1
        %v1127 = vsel %vm1125, %v1126, %v1122
        %v1128 = vadd.s32 %v1123, %v1127
        %v1129 = vadd.s32 %v1128, 536870912
        %v1130 = vshrl.u32 %v1129, 30
        %v1131 = vshll.u32 %v1130, 30
        %v1132 = vsub.s32 %v1128, %v1131
        %vm1133 = vcmp.lt.s32.totalorder %v1132, 0
        %v1134 = vsub.s32 0, %v1132
        %v1135 = vsel %vm1133, %v1134, %v1132
        %v1136 = vclz %v1135
        %v1137 = vsub.s32 %v1136, 2
        %vm1138 = vcmp.gt.s32.totalorder 0, %v1137
        %v1139 = vsel %vm1138, 0, %v1137
        %v1140 = vsub.s32 32, %v1139
        %v1141 = vshll.u32 %v1132, %v1139
        %v1142 = vshrl.u32 %v1124, %v1140
        %v1143 = vor.u32 %v1141, %v1142
        %v1144 = vsub.s32 4294967266, %v1139
        %v1145 = vadd.s32 %v1144, 127
        %v1146 = vshll.u32 %v1145, 23
        %v1147 = vor.u32 4788187, %v1146
        %v1148 = vand.u32 2147483647, %v1147
        %v1150 = vcvt.s32.f32 %v1143
        %v1151 = vmul.f32 %v1150, %v1148
        %v1152 = vxor.u32 %v1151, 2147483648
        %v1153 = vsel %vm1032, %v1152, %v1151
        %v1154 = vsub.s32 4, %v1130
        %v1155 = vsel %vm1032, %v1154, %v1130
        %v1156 = vsel %vm1031, %v258, %v1153
        %v1157 = vsel %vm1031, 0, %v1155
        %v1158 = vmul.f32 %v1156, %v1156
        %v1159 = vmul.f32 %v1158, -0.001358992
        %v1160 = vadd.f32 %v1159, 0.041655596
        %v1161 = vmul.f32 %v1158, %v1160
        %v1162 = vadd.f32 %v1161, -0.4999988
        %v1163 = vmul.f32 %v1158, %v1162
        %v1164 = vadd.f32 1.0, %v1163
        %v1165 = vmul.f32 %v1156, %v1156
        %v1166 = vmul.f32 %v1165, -0.00019511016
        %v1167 = vadd.f32 %v1166, 0.008332121
        %v1168 = vmul.f32 %v1165, %v1167
        %v1169 = vadd.f32 %v1168, -0.16666654
        %v1170 = vmul.f32 %v1165, %v1169
        %v1171 = vadd.f32 %v1170, 1.0
        %v1172 = vmul.f32 %v1171, %v1156
        %vm1173 = vweird.f32 %v258
        %v1174 = vand.u32 %v1157, 3
        %vm1175 = vcmp.lt.s32.totalorder %v1174, 2
        %vm1176 = vcmp.eq.s32.totalorder %v1174, 0
        %v1177 = vxor.u32 %v1172, 2147483648
        %v1178 = vsel %vm1176, %v1164, %v1177
        %vm1179 = vcmp.eq.s32.totalorder %v1174, 2
        %v1180 = vxor.u32 %v1164, 2147483648
        %v1181 = vsel %vm1179, %v1180, %v1172
        %v1182 = vsel %vm1175, %v1178, %v1181
        %v1183 = vsel %vm1173, nan, %v1182
        %v1184 = vand.u32 2147483647, %v259
        %vm1185 = vcmp.le.f32.partialorder %v1184, 0.7853982
        %vm1186 = vcmp.lt.s32.totalorder %v259, 0
        %v1187 = vand.u32 %v259, 2139095040
        %v1188 = vshrl.u32 %v1187, 23
        %v1189 = vsub.s32 %v1188, 127
        %v1190 = vand.u32 2147483647, %v259
        %v1191 = vand.u32 %v1190, 8388607
        %v1192 = vor.u32 %v1191, 8388608
        %v1193 = vsub.s32 0, %v1192
        %v1194 = vadd.s32 %v1189, 1
        %vm1195 = vcmp.gt.s32.totalorder %v1194, 0
        %v1196 = vsel %vm1195, %v1194, 0
        %v1197 = vshrl.u32 %v1196, 5
        %v1198 = vand.u32 %v1196, 31
        %v1199 = vsub.s32 32, %v1198
        %v1200 = vshrl.u32 683565275, %v1199
        %v1201 = vshll.u32 683565275, %v1198
        %v1202 = vshrl.u32 2475754826, %v1199
        %v1203 = vor.u32 %v1201, %v1202
        %v1204 = vshll.u32 2475754826, %v1198
        %v1205 = vshrl.u32 2131351028, %v1199
        %v1206 = vor.u32 %v1204, %v1205
        %v1207 = vshll.u32 2131351028, %v1198
        %v1208 = vshrl.u32 2102212464, %v1199
        %v1209 = vor.u32 %v1207, %v1208
        %v1210 = vshll.u32 2102212464, %v1198
        %v1211 = vshrl.u32 920167782, %v1199
        %v1212 = vor.u32 %v1210, %v1211
        %v1213 = vshll.u32 920167782, %v1198
        %v1214 = vshrl.u32 1326507024, %v1199
        %v1215 = vor.u32 %v1213, %v1214
        %vm1216 = vcmp.lt.s32.totalorder %v1197, 1
        %vm1217 = vcmp.lt.s32.totalorder %v1197, 2
        %vm1218 = vcmp.lt.s32.totalorder %v1197, 3
        %vm1219 = vcmp.lt.s32.totalorder %v1197, 4
        %v1220 = vsel %vm1216, %v1200, %v1203
        %v1221 = vsel %vm1219, %v1209, 2102212464
        %v1222 = vsel %vm1218, %v1206, %v1221
        %v1223 = vsel %vm1217, %v1220, %v1222
        %v1224 = vsel %vm1216, %v1203, %v1206
        %v1225 = vsel %vm1219, %v1212, 920167782
        %v1226 = vsel %vm1218, %v1209, %v1225
        %v1227 = vsel %vm1217, %v1224, %v1226
        %v1228 = vsel %vm1216, %v1206, %v1209
        %v1229 = vsel %vm1219, %v1215, 1326507024
        %v1230 = vsel %vm1218, %v1212, %v1229
        %v1231 = vsel %vm1217, %v1228, %v1230
        %v1232 = vshll.u32 %v1192, 8
        %v1233 = vand.u32 %v1232, 65535
        %v1234 = vshrl.u32 %v1232, 16
        %v1235 = vand.u32 %v1231, 65535
        %v1236 = vshrl.u32 %v1231, 16
        %v1237 = vmul.u32 %v1233, %v1235
        %v1238 = vmul.u32 %v1233, %v1236
        %v1239 = vmul.u32 %v1234, %v1235
        %v1240 = vmul.u32 %v1234, %v1236
        %v1241 = vshll.u32 %v1238, 16
        %v1242 = vshrl.u32 %v1238, 16
        %v1243 = vshll.u32 %v1239, 16
        %v1244 = vshrl.u32 %v1239, 16
        %vm1245 = vc.u32 %v1237, %v1241
        %v1246 = vsel %vm1245, 1, 0
        %v1247 = vadd.s32 %v1237, %v1241
        %v1248 = vadd.s32 %v1240, %v1246
        %vm1249 = vc.u32 %v1247, %v1243
        %v1250 = vsel %vm1249, 1, 0
        %v1251 = vadd.s32 %v1247, %v1243
        %v1252 = vadd.s32 %v1248, %v1250
        %v1253 = vadd.s32 %v1252, %v1242
        %v1254 = vadd.s32 %v1253, %v1244
        %v1255 = vand.u32 %v1232, 65535
        %v1256 = vshrl.u32 %v1232, 16
        %v1257 = vand.u32 %v1227, 65535
        %v1258 = vshrl.u32 %v1227, 16
        %v1259 = vmul.u32 %v1255, %v1257
        %v1260 = vmul.u32 %v1255, %v1258
        %v1261 = vmul.u32 %v1256, %v1257
        %v1262 = vmul.u32 %v1256, %v1258
        %v1263 = vshll.u32 %v1260, 16
        %v1264 = vshrl.u32 %v1260, 16
        %v1265 = vshll.u32 %v1261, 16
        %v1266 = vshrl.u32 %v1261, 16
        %vm1267 = vc.u32 %v1259, %v1263
        %v1268 = vsel %vm1267, 1, 0
        %v1269 = vadd.s32 %v1259, %v1263
        %v1270 = vadd.s32 %v1262, %v1268
        %vm1271 = vc.u32 %v1269, %v1265
        %v1272 = vsel %vm1271, 1, 0
        %v1273 = vadd.s32 %v1269, %v1265
        %v1274 = vadd.s32 %v1270, %v1272
        %v1275 = vadd.s32 %v1274, %v1264
        %v1276 = vadd.s32 %v1275, %v1266
        %v1277 = vmul.u32 %v1232, %v1223
        %v1278 = vadd.s32 %v1254, %v1273
        %vm1279 = vc.u32 %v1254, %v1273
        %v1280 = vadd.s32 %v1276, 1
        %v1281 = vsel %vm1279, %v1280, %v1276
        %v1282 = vadd.s32 %v1277, %v1281
        %v1283 = vadd.s32 %v1282, 536870912
        %v1284 = vshrl.u32 %v1283, 30
        %v1285 = vshll.u32 %v1284, 30
        %v1286 = vsub.s32 %v1282, %v1285
        %vm1287 = vcmp.lt.s32.totalorder %v1286, 0
        %v1288 = vsub.s32 0, %v1286
        %v1289 = vsel %vm1287, %v1288, %v1286
        %v1290 = vclz %v1289
        %v1291 = vsub.s32 %v1290, 2
        %vm1292 = vcmp.gt.s32.totalorder 0, %v1291
        %v1293 = vsel %vm1292, 0, %v1291
        %v1294 = vsub.s32 32, %v1293
        %v1295 = vshll.u32 %v1286, %v1293
        %v1296 = vshrl.u32 %v1278, %v1294
        %v1297 = vor.u32 %v1295, %v1296
        %v1298 = vsub.s32 4294967266, %v1293
        %v1299 = vadd.s32 %v1298, 127
        %v1300 = vshll.u32 %v1299, 23
        %v1301 = vor.u32 4788187, %v1300
        %v1302 = vand.u32 2147483647, %v1301
        %v1304 = vcvt.s32.f32 %v1297
        %v1305 = vmul.f32 %v1304, %v1302
        %v1306 = vxor.u32 %v1305, 2147483648
        %v1307 = vsel %vm1186, %v1306, %v1305
        %v1308 = vsub.s32 4, %v1284
        %v1309 = vsel %vm1186, %v1308, %v1284
        %v1310 = vsel %vm1185, %v259, %v1307
        %v1311 = vsel %vm1185, 0, %v1309
        %v1312 = vmul.f32 %v1310, %v1310
        %v1313 = vmul.f32 %v1312, -0.001358992
        %v1314 = vadd.f32 %v1313, 0.041655596
        %v1315 = vmul.f32 %v1312, %v1314
        %v1316 = vadd.f32 %v1315, -0.4999988
        %v1317 = vmul.f32 %v1312, %v1316
        %v1318 = vadd.f32 1.0, %v1317
        %v1319 = vmul.f32 %v1310, %v1310
        %v1320 = vmul.f32 %v1319, -0.00019511016
        %v1321 = vadd.f32 %v1320, 0.008332121
        %v1322 = vmul.f32 %v1319, %v1321
        %v1323 = vadd.f32 %v1322, -0.16666654
        %v1324 = vmul.f32 %v1319, %v1323
        %v1325 = vadd.f32 %v1324, 1.0
        %v1326 = vmul.f32 %v1325, %v1310
        %vm1327 = vweird.f32 %v259
        %v1328 = vand.u32 %v1311, 3
        %vm1329 = vcmp.lt.s32.totalorder %v1328, 2
        %vm1330 = vcmp.eq.s32.totalorder %v1328, 0
        %v1331 = vxor.u32 %v1326, 2147483648
        %v1332 = vsel %vm1330, %v1318, %v1331
        %vm1333 = vcmp.eq.s32.totalorder %v1328, 2
        %v1334 = vxor.u32 %v1318, 2147483648
        %v1335 = vsel %vm1333, %v1334, %v1326
        %v1336 = vsel %vm1329, %v1332, %v1335
        %v1337 = vsel %vm1327, nan, %v1336
        %1338 = vst [vmem:[%s176] sm:$0xff] %v413
        %1339 = vst [vmem:[%s176 + $0x8] sm:$0xff] %v567
        %1340 = vst [vmem:[%s176 + $0x10] sm:$0xff] %v721
        %1341 = vst [vmem:[%s176 + $0x18] sm:$0xff] %v875
        %1342 = vst [vmem:[%s176 + $0x20] sm:$0xff] %v1029
        %1343 = vst [vmem:[%s176 + $0x28] sm:$0xff] %v1183
        %1344 = vst [vmem:[%s176 + $0x30] sm:$0xff] %v1337
        %s1345 = sand.u32 %s93, 1
        %s1346 = scalar_lea.sflag [#allocation3], %s1345
        %s1347 = sand.u32 %s93, 1
        %s1348 = smul.addr %s1347, 56
        %s1349 = scalar_lea.vmem [#allocation2], %s1348
        // Predicated region
        $region33: #{tpu_custom_call.1} parent=31 // pred_check
          %p1350 = pneg %p103
        $region34: #{tpu_custom_call.1} parent=31 // pred_check_branch
          %1352 = sbr.rel (%p1350) target = $region36
        $region35: #{tpu_custom_call.1} parent=31 // pred_region
          %s1353 = smul.u32 7, %s17
          %s1354 = ssub.s32 25, %s1353
          %p1355 = scmp.lt.s32.totalorder %s1354, 7
          %s1356 = scalar_select %p1355, %s1354, 7
          %s1357 = smul.u32 8, %s1356
          %s1358 = ssub.s32 56, %s1357
          %s1359 = sshll.u32 %s1358, 4
          %1360 = vsyncadd %s1346, %s1359
          %p1361 = scmp.ne.s32.totalorder 0, %s1357
          %s1362 = smul.addr %s1353, 8
          %s1363 = scalar_lea.hbm %s3, %s1362
          %s1364 = smul.u32 8, %s1356
          %s1365 = sshll.u32 %s1349, 4
          %s1366 = int_to_ptr.vmem [resolvable:$true] %s1365
          %s1367 = sshll.u32 %s1363, 4
          %s1368 = int_to_ptr.hbm [resolvable:$true] %s1367
          %s1369 = sshll.u32 %s1364, 4
          %1373 = dma.vmem_to_hbm [thread:$0]  (%p1361), %s1366, %s1369, %s1368, %s1346, 128, 128, 8
        $region36: #{tpu_custom_call.1} parent=31 // pred_fallthru
          _
      $region32: #{tpu_custom_call.1} parent=5 // pred_fallthru
        _
      %p1374 = scmp.le.s32.totalorder 2, %s12
      // Predicated region
      $region37: #{tpu_custom_call.1} parent=5 // pred_check
        %p1375 = pneg %p1374
      $region38: #{tpu_custom_call.1} parent=5 // pred_check_branch
        %1377 = sbr.rel (%p1375) target = $region40
      $region39: #{tpu_custom_call.1} parent=5 // pred_region
        %s1378 = ssub.s32 %s12, 2
        // Predicated region
        $region41: #{tpu_custom_call.1} parent=39 // pred_check
          %p1379 = pneg %p109
        $region42: #{tpu_custom_call.1} parent=39 // pred_check_branch
          %1381 = sbr.rel (%p1379) target = $region44
        $region43: #{tpu_custom_call.1} parent=39 // pred_region
          %s1382 = sand.u32 %s94, 1
          %s1383 = scalar_lea.sflag [#allocation3], %s1382
          %s1384 = sand.u32 %s94, 1
          %s1385 = smul.addr %s1384, 56
          %s1386 = scalar_lea.vmem [#allocation2], %s1385
          %1388 = dma.done %s1383, 896
        $region44: #{tpu_custom_call.1} parent=39 // pred_fallthru
          _
      $region40: #{tpu_custom_call.1} parent=5 // pred_fallthru
        _
    $region6: #{tpu_custom_call.1} parent=1 // loop_footer
      %s16 = sadd.s32 1, %s12
    $region7: #{tpu_custom_call.1} parent=1 // loop_footer_branch
      %11 = sbr.rel target = $region3
    $region8: #{tpu_custom_call.1} parent=1 // loop_exit
      _
    %1389 = vsyncpa [#allocation3], 1
    %s1390 = scalar_lea.sflag [#allocation3], 1
    %1391 = vsyncpa %s1390, 1

</llo_original>
